<compile_context>
chip_gen: v7x
topology: tpu7x:2x2x1
jax: 0.10.0
libtpu: 0.0.40
codegen_flags: <defaults>
</compile_context>

<pallas_src>
import jax
import jax.numpy as jnp
from jax.experimental import pallas as pl
from jax.experimental.pallas import tpu as pltpu

_BF16 = jnp.bfloat16
_F32 = jnp.float32


def _round_up(x, m):
    return ((x + m - 1) // m) * m


def _pad_cols(x, width):
    """Zero-pad the last dim of a (B, C) array up to `width`."""
    if x.shape[1] == width:
        return x
    return jnp.pad(x, ((0, 0), (0, width - x.shape[1])))


def _grid_steps(batch):
    """1 grid step everywhere (kernel is overhead-bound); 2 parallel steps on
    2-TensorCore chips (v7x class) for large, evenly divisible batches."""
    try:
        kind = jax.devices()[0].device_kind.lower()
    except Exception:  # pragma: no cover
        kind = ""
    if ("v7" in kind or "7x" in kind) and batch >= 256 and batch % 16 == 0:
        return 2
    return 1


# ----------------------------------------------------------------------------- kernels
def _actor_kernel(x_ref, w1_ref, w2_ref, w3_ref, out_ref):
    """tanh(fc_action(FCBody(obs))) -- fused relu, relu, tanh. bf16 MXU, f32 VPU."""
    x = x_ref[...].astype(_BF16)
    w1 = w1_ref[...]
    w2 = w2_ref[...]
    w3 = w3_ref[...]
    s = w1.shape[0] - 1      # padded state dim (multiple of 8)
    h1 = w2.shape[0] - 1
    h2 = w3.shape[0] - 1

    h = jnp.dot(x, w1[:s], preferred_element_type=_F32) + w1[s:s + 1].astype(_F32)
    h = jnp.maximum(h, 0.0)
    h = jnp.dot(h.astype(_BF16), w2[:h1], preferred_element_type=_F32) + w2[h1:h1 + 1].astype(_F32)
    h = jnp.maximum(h, 0.0)
    y = jnp.dot(h.astype(_BF16), w3[:h2], preferred_element_type=_F32) + w3[h2:h2 + 1].astype(_F32)
    out_ref[...] = jnp.tanh(y).astype(out_ref.dtype)


def _critic2_kernel(obs_ref, act_ref, w1_ref, w2_ref, w3_ref, out_ref):
    """Both critics in 3 matmuls via block-diagonal packed weights.

    q[:, c] = fc_critic_c(FCBody_c(cat(obs, a)));  the concat is a split matmul.
    """
    obs = obs_ref[...].astype(_BF16)
    act = act_ref[...].astype(_BF16)
    s = obs_ref.shape[1]                 # padded state dim
    a = act_ref.shape[1]                 # padded action dim
    w1 = w1_ref[...]                     # (s + a + 1, 2*h1)
    w2 = w2_ref[...]                     # (2*h1 + 1,  2*h2)   block diagonal
    w3 = w3_ref[...]                     # (2*h2 + 1,  2)      block diagonal
    hh1 = w2.shape[0] - 1
    hh2 = w3.shape[0] - 1

    h = (jnp.dot(obs, w1[:s], preferred_element_type=_F32)
         + jnp.dot(act, w1[s:s + a], preferred_element_type=_F32)
         + w1[s + a:s + a + 1].astype(_F32))
    h = jnp.maximum(h, 0.0)
    h = jnp.dot(h.astype(_BF16), w2[:hh1], preferred_element_type=_F32) + w2[hh1:hh1 + 1].astype(_F32)
    h = jnp.maximum(h, 0.0)
    q = jnp.dot(h.astype(_BF16), w3[:hh2], preferred_element_type=_F32) + w3[hh2:hh2 + 1].astype(_F32)
    out_ref[...] = q.astype(out_ref.dtype)


def _actor_critic_kernel(obs_ref, aw1_ref, aw2_ref, aw3_ref,
                         cw1_ref, cw2_ref, cw3_ref,
                         a_out_ref, q_out_ref):
    """Fused target path: a = tanh(actor(obs)) stays in VMEM and feeds both critics."""
    obs = obs_ref[...].astype(_BF16)

    # ------- actor -------
    aw1 = aw1_ref[...]
    aw2 = aw2_ref[...]
    aw3 = aw3_ref[...]
    s_pad = aw1.shape[0] - 1
    h1 = aw2.shape[0] - 1
    h2 = aw3.shape[0] - 1
    adim = aw3.shape[1]

    h = jnp.dot(obs, aw1[:s_pad], preferred_element_type=_F32) + aw1[s_pad:s_pad + 1].astype(_F32)
    h = jnp.maximum(h, 0.0)
    h = jnp.dot(h.astype(_BF16), aw2[:h1], preferred_element_type=_F32) + aw2[h1:h1 + 1].astype(_F32)
    h = jnp.maximum(h, 0.0)
    act = jnp.tanh(jnp.dot(h.astype(_BF16), aw3[:h2], preferred_element_type=_F32)
                   + aw3[h2:h2 + 1].astype(_F32))
    a_out_ref[...] = act.astype(a_out_ref.dtype)

    # ------- both critics on (obs, act) -------
    cw1 = cw1_ref[...]
    cw2 = cw2_ref[...]
    cw3 = cw3_ref[...]
    bias_row = cw1.shape[0] - 1
    ch1 = cw2.shape[0] - 1
    ch2 = cw3.shape[0] - 1
    act_bf = act.astype(_BF16)

    g = (jnp.dot(obs, cw1[:s_pad], preferred_element_type=_F32)
         + jnp.dot(act_bf, cw1[s_pad:s_pad + adim], preferred_element_type=_F32)
         + cw1[bias_row:bias_row + 1].astype(_F32))
    g = jnp.maximum(g, 0.0)
    g = jnp.dot(g.astype(_BF16), cw2[:ch1], preferred_element_type=_F32) + cw2[ch1:ch1 + 1].astype(_F32)
    g = jnp.maximum(g, 0.0)
    q = jnp.dot(g.astype(_BF16), cw3[:ch2], preferred_element_type=_F32) + cw3[ch2:ch2 + 1].astype(_F32)
    q_out_ref[...] = q.astype(q_out_ref.dtype)


# ----------------------------------------------------------------------------- wrappers
def td3_forward(params, obs):
    """Equivalent of TD3Net.forward: tanh(fc_action(actor_body(obs)))."""
    w1, w2, w3 = params["a_w1"], params["a_w2"], params["a_w3"]
    batch, s = obs.shape
    s_pad = _round_up(s, 8)
    assert w1.shape[0] == s_pad + 1
    h1, h2, adim = w1.shape[1], w2.shape[1], w3.shape[1]

    obs = _pad_cols(obs, s_pad)
    steps = _grid_steps(batch)
    tb = batch // steps

    flops = 2 * batch * (s_pad * h1 + h1 * h2 + h2 * adim)
    bytes_accessed = 4 * batch * (s_pad + adim) + 2 * (w1.size + w2.size + w3.size)

    return pl.pallas_call(
        _actor_kernel,
        out_shape=jax.ShapeDtypeStruct((batch, adim), jnp.float32),
        grid_spec=pltpu.PrefetchScalarGridSpec(
            num_scalar_prefetch=0,
            grid=(steps,),
            in_specs=[
                pl.BlockSpec((tb, s_pad), lambda i: (i, 0)),
                pl.BlockSpec(w1.shape, lambda i: (0, 0)),
                pl.BlockSpec(w2.shape, lambda i: (0, 0)),
                pl.BlockSpec(w3.shape, lambda i: (0, 0)),
            ],
            out_specs=pl.BlockSpec((tb, adim), lambda i: (i, 0)),
        ),
        compiler_params=pltpu.CompilerParams(dimension_semantics=("parallel",)),
        cost_estimate=pl.CostEstimate(
            flops=int(flops),
            transcendentals=int(batch * adim),
            bytes_accessed=int(bytes_accessed)),
    )(obs, w1, w2, w3)


def td3_q(params, obs, a):
    """Equivalent of TD3Net.q: (q1, q2). Both critics in a single fused kernel."""
    w1, w2, w3 = params["c_w1"], params["c_w2"], params["c_w3"]
    batch, s = obs.shape
    adim = a.shape[1]
    s_pad = _round_up(s, 8)
    a_pad = _round_up(adim, 8)
    assert w1.shape[0] == s_pad + a_pad + 1
    h1x2, h2x2 = w1.shape[1], w2.shape[1]

    obs = _pad_cols(obs, s_pad)
    a = _pad_cols(a, a_pad)
    steps = _grid_steps(batch)
    tb = batch // steps

    flops = 2 * batch * ((s_pad + a_pad) * h1x2 + h1x2 * h2x2 + h2x2 * 2)
    bytes_accessed = 4 * batch * (s_pad + a_pad + 2) + 2 * (w1.size + w2.size + w3.size)

    q_packed = pl.pallas_call(
        _critic2_kernel,
        out_shape=jax.ShapeDtypeStruct((batch, 2), jnp.float32),
        grid_spec=pltpu.PrefetchScalarGridSpec(
            num_scalar_prefetch=0,
            grid=(steps,),
            in_specs=[
                pl.BlockSpec((tb, s_pad), lambda i: (i, 0)),
                pl.BlockSpec((tb, a_pad), lambda i: (i, 0)),
                pl.BlockSpec(w1.shape, lambda i: (0, 0)),
                pl.BlockSpec(w2.shape, lambda i: (0, 0)),
                pl.BlockSpec(w3.shape, lambda i: (0, 0)),
            ],
            out_specs=pl.BlockSpec((tb, 2), lambda i: (i, 0)),
        ),
        compiler_params=pltpu.CompilerParams(dimension_semantics=("parallel",)),
        cost_estimate=pl.CostEstimate(
            flops=int(flops),
            transcendentals=0,
            bytes_accessed=int(bytes_accessed)),
    )(obs, a, w1, w2, w3)

    return q_packed[:, 0:1], q_packed[:, 1:2]


def td3_act_q(params, obs):
    """Fused target-value path: a = forward(obs); (q1, q2) = q(obs, a) -- one pallas_call."""
    aw1, aw2, aw3 = params["a_w1"], params["a_w2"], params["a_w3"]
    cw1, cw2, cw3 = params["c_w1"], params["c_w2"], params["c_w3"]
    batch, s = obs.shape
    s_pad = _round_up(s, 8)
    assert aw1.shape[0] == s_pad + 1
    h1, h2, adim = aw1.shape[1], aw2.shape[1], aw3.shape[1]
    h1x2, h2x2 = cw1.shape[1], cw2.shape[1]

    obs = _pad_cols(obs, s_pad)
    steps = _grid_steps(batch)
    tb = batch // steps

    flops = 2 * batch * (s_pad * h1 + h1 * h2 + h2 * adim
                         + (s_pad + adim) * h1x2 + h1x2 * h2x2 + h2x2 * 2)
    bytes_accessed = (4 * batch * (s_pad + adim + 2)
                      + 2 * (aw1.size + aw2.size + aw3.size + cw1.size + cw2.size + cw3.size))

    a_out, q_packed = pl.pallas_call(
        _actor_critic_kernel,
        out_shape=(jax.ShapeDtypeStruct((batch, adim), jnp.float32),
                   jax.ShapeDtypeStruct((batch, 2), jnp.float32)),
        grid_spec=pltpu.PrefetchScalarGridSpec(
            num_scalar_prefetch=0,
            grid=(steps,),
            in_specs=[
                pl.BlockSpec((tb, s_pad), lambda i: (i, 0)),
                pl.BlockSpec(aw1.shape, lambda i: (0, 0)),
                pl.BlockSpec(aw2.shape, lambda i: (0, 0)),
                pl.BlockSpec(aw3.shape, lambda i: (0, 0)),
                pl.BlockSpec(cw1.shape, lambda i: (0, 0)),
                pl.BlockSpec(cw2.shape, lambda i: (0, 0)),
                pl.BlockSpec(cw3.shape, lambda i: (0, 0)),
            ],
            out_specs=[
                pl.BlockSpec((tb, adim), lambda i: (i, 0)),
                pl.BlockSpec((tb, 2), lambda i: (i, 0)),
            ],
        ),
        compiler_params=pltpu.CompilerParams(dimension_semantics=("parallel",)),
        cost_estimate=pl.CostEstimate(
            flops=int(flops),
            transcendentals=int(batch * adim),
            bytes_accessed=int(bytes_accessed)),
    )(obs, aw1, aw2, aw3, cw1, cw2, cw3)

    return a_out, q_packed[:, 0:1], q_packed[:, 1:2]


# ----------------------------------------------------------------------------- params
def make_td3_params(key, state_dim, action_dim, hidden=(32, 32)):
    """Build bf16 packed params (8-aligned, bias-folded, block-diagonal critics).

    Returns (params, layers):
      params -- packed kernel weights
      layers -- per-layer (W, b) bf16 arrays, used by the pure-JAX reference.
    Biases are small random values (layer_init uses zeros) so the bias path is exercised.
    """
    h1, h2 = hidden
    s_pad = _round_up(state_dim, 8)
    a_pad = _round_up(action_dim, 8)
    cin = state_dim + action_dim
    ks = jax.random.split(key, 18)

    def w_init(k, fan_in, out, scale):
        return (jax.random.normal(k, (fan_in, out), jnp.float32)
                * (scale / jnp.sqrt(fan_in))).astype(_BF16)

    def b_init(k, out):
        return (0.1 * jax.random.normal(k, (out,), jnp.float32)).astype(_BF16)

    layers = {
        "a1":   (w_init(ks[0], state_dim, h1, 1.0), b_init(ks[1], h1)),
        "a2":   (w_init(ks[2], h1, h2, 1.0),        b_init(ks[3], h2)),
        "a3":   (w_init(ks[4], h2, action_dim, 1e-3), b_init(ks[5], action_dim)),
        "c1_1": (w_init(ks[6], cin, h1, 1.0),       b_init(ks[7], h1)),
        "c1_2": (w_init(ks[8], h1, h2, 1.0),        b_init(ks[9], h2)),
        "c1_3": (w_init(ks[10], h2, 1, 1e-3),       b_init(ks[11], 1)),
        "c2_1": (w_init(ks[12], cin, h1, 1.0),      b_init(ks[13], h1)),
        "c2_2": (w_init(ks[14], h1, h2, 1.0),       b_init(ks[15], h2)),
        "c2_3": (w_init(ks[16], h2, 1, 1e-3),       b_init(ks[17], 1)),
    }

    def aug(w, b, in_pad):
        out = w.shape[1]
        m = jnp.zeros((in_pad + 1, out), _BF16)
        m = m.at[:w.shape[0], :].set(w)
        m = m.at[in_pad, :].set(b)
        return m

    # actor (h1, h2 assumed multiples of 8)
    a_w1 = aug(*layers["a1"], s_pad)
    a_w2 = aug(*layers["a2"], h1)
    a_w3 = aug(*layers["a3"], h2)

    # critic layer 1: both critics side by side, obs rows / act rows 8-aligned
    c_w1 = jnp.zeros((s_pad + a_pad + 1, 2 * h1), _BF16)
    for col, name in ((0, "c1_1"), (h1, "c2_1")):
        w, b = layers[name]
        c_w1 = c_w1.at[:state_dim, col:col + h1].set(w[:state_dim])
        c_w1 = c_w1.at[s_pad:s_pad + action_dim, col:col + h1].set(w[state_dim:])
        c_w1 = c_w1.at[s_pad + a_pad, col:col + h1].set(b)

    # critic layer 2: block diagonal
    c_w2 = jnp.zeros((2 * h1 + 1, 2 * h2), _BF16)
    for row, col, name in ((0, 0, "c1_2"), (h1, h2, "c2_2")):
        w, b = layers[name]
        c_w2 = c_w2.at[row:row + h1, col:col + h2].set(w)
        c_w2 = c_w2.at[2 * h1, col:col + h2].set(b)

    # critic layer 3: block diagonal -> (B, 2) straight off the MXU
    c_w3 = jnp.zeros((2 * h2 + 1, 2), _BF16)
    for row, col, name in ((0, 0, "c1_3"), (h2, 1, "c2_3")):
        w, b = layers[name]
        c_w3 = c_w3.at[row:row + h2, col:col + 1].set(w)
        c_w3 = c_w3.at[2 * h2, col].set(b[0])

    params = {"a_w1": a_w1, "a_w2": a_w2, "a_w3": a_w3,
              "c_w1": c_w1, "c_w2": c_w2, "c_w3": c_w3}
    return params, layers


# ----------------------------------------------------------------------------- reference
def _ref_linear(x, w, b):
    return (jnp.dot(x.astype(_BF16), w, preferred_element_type=_F32)
            + b.astype(_F32))


def ref_forward(layers, obs):
    h = jnp.maximum(_ref_linear(obs, *layers["a1"]), 0.0)
    h = jnp.maximum(_ref_linear(h, *layers["a2"]), 0.0)
    return jnp.tanh(_ref_linear(h, *layers["a3"]))


def ref_q(layers, obs, a):
    x = jnp.concatenate([obs, a], axis=1)
    outs = []
    for c in ("c1", "c2"):
        h = jnp.maximum(_ref_linear(x, *layers[c + "_1"]), 0.0)
        h = jnp.maximum(_ref_linear(h, *layers[c + "_2"]), 0.0)
        outs.append(_ref_linear(h, *layers[c + "_3"]))
    return outs[0], outs[1]


# ----------------------------------------------------------------------------- main
if __name__ == "__main__":
    key = jax.random.PRNGKey(0)
    k_param, k_obs, k_act = jax.random.split(key, 3)

    batch, state_dim, action_dim = 8, 16, 8
    params, layers = make_td3_params(k_param, state_dim, action_dim, hidden=(32, 32))

    obs = jax.random.normal(k_obs, (batch, state_dim), jnp.float32)
    act = jax.random.uniform(k_act, (batch, action_dim), jnp.float32, minval=-1.0, maxval=1.0)

    # forward (actor)
    a_out = jax.block_until_ready(td3_forward(params, obs))
    # q (both critics, one fused block-diagonal kernel)
    q1, q2 = td3_q(params, obs, act)
    q1, q2 = jax.block_until_ready((q1, q2))
    # fused actor->critic target path (one pallas_call)
    a_f, qf1, qf2 = td3_act_q(params, obs)
    a_f, qf1, qf2 = jax.block_until_ready((a_f, qf1, qf2))

    # pure-JAX references (same bf16 weights / bf16 MXU operands)
    a_ref = ref_forward(layers, obs)
    q1_ref, q2_ref = ref_q(layers, obs, act)
    qf1_ref, qf2_ref = ref_q(layers, obs, a_ref)

    assert a_out.shape == (batch, action_dim)
    assert q1.shape == (batch, 1) and q2.shape == (batch, 1)
    assert a_f.shape == (batch, action_dim)
    assert qf1.shape == (batch, 1) and qf2.shape == (batch, 1)

    assert jnp.allclose(a_out, a_ref, atol=1e-4, rtol=1e-3)
    assert jnp.allclose(q1, q1_ref, atol=1e-4, rtol=1e-3)
    assert jnp.allclose(q2, q2_ref, atol=1e-4, rtol=1e-3)

    # fused path vs. composition of the standalone Pallas kernels (should be ~identical)
    q1_c, q2_c = td3_q(params, obs, a_out)
    assert jnp.allclose(a_f, a_out, atol=1e-5, rtol=1e-5)
    assert jnp.allclose(qf1, q1_c, atol=1e-5, rtol=1e-4)
    assert jnp.allclose(qf2, q2_c, atol=1e-5, rtol=1e-4)
    # fused path vs. pure-JAX reference (looser: tanh impl + bf16 re-rounding of the action)
    assert jnp.allclose(qf1, qf1_ref, atol=5e-3, rtol=5e-3)
    assert jnp.allclose(qf2, qf2_ref, atol=5e-3, rtol=5e-3)

    print("KERNEL_OK")
</pallas_src>

<mosaic_0001>
module attributes {stable_mosaic.version = 11 : i64} {
  func.func @_actor_kernel(%arg0: i32, %arg1: memref<8x16xf32, #tpu.memory_space<vmem>>, %arg2: memref<17x32xbf16, #tpu.memory_space<vmem>>, %arg3: memref<33x32xbf16, #tpu.memory_space<vmem>>, %arg4: memref<33x8xbf16, #tpu.memory_space<vmem>>, %arg5: memref<8x8xf32, #tpu.memory_space<vmem>>) attributes {dimension_semantics = [#tpu.dimension_semantics<parallel>], iteration_bounds = array<i64: 1>, scalar_prefetch = 0 : i64, scratch_operands = 0 : i64, tpu.core_type = #tpu.core_type<tc>, window_params = [{transform_indices = @transform_0, window_bounds = array<i64: 8, 16>}, {pipeline_mode = #tpu.pipeline_mode<synchronous>, transform_indices = @transform_1, window_bounds = array<i64: 17, 32>}, {pipeline_mode = #tpu.pipeline_mode<synchronous>, transform_indices = @transform_2, window_bounds = array<i64: 33, 32>}, {pipeline_mode = #tpu.pipeline_mode<synchronous>, transform_indices = @transform_3, window_bounds = array<i64: 33, 8>}, {transform_indices = @transform_4, window_bounds = array<i64: 8, 8>}]} {
    %c0 = arith.constant 0 : index
    %c0_0 = arith.constant 0 : index
    %0 = vector.load %arg1[%c0, %c0_0] : memref<8x16xf32, #tpu.memory_space<vmem>>, vector<8x16xf32>
    %1 = arith.truncf %0 : vector<8x16xf32> to vector<8x16xbf16>
    %c0_1 = arith.constant 0 : index
    %c0_2 = arith.constant 0 : index
    %2 = vector.load %arg2[%c0_1, %c0_2] : memref<17x32xbf16, #tpu.memory_space<vmem>>, vector<17x32xbf16>
    %c0_3 = arith.constant 0 : index
    %c0_4 = arith.constant 0 : index
    %3 = vector.load %arg3[%c0_3, %c0_4] : memref<33x32xbf16, #tpu.memory_space<vmem>>, vector<33x32xbf16>
    %c0_5 = arith.constant 0 : index
    %c0_6 = arith.constant 0 : index
    %4 = vector.load %arg4[%c0_5, %c0_6] : memref<33x8xbf16, #tpu.memory_space<vmem>>, vector<33x8xbf16>
    %5 = vector.extract_strided_slice %2 {offsets = [0, 0], sizes = [16, 32], strides = [1, 1]} : vector<17x32xbf16> to vector<16x32xbf16>
    %cst = arith.constant dense<0.000000e+00> : vector<8x32xf32>
    %6 = tpu.matmul %1, %5, %cst {dimension_numbers = #tpu.dot_dimension_numbers<[1], [0], [0], [1], [0, 0, 1, 1], [], []>} : vector<8x16xbf16>, vector<16x32xbf16>, vector<8x32xf32> -> vector<8x32xf32>
    %7 = vector.extract_strided_slice %2 {offsets = [16, 0], sizes = [1, 32], strides = [1, 1]} : vector<17x32xbf16> to vector<1x32xbf16>
    %8 = arith.extf %7 : vector<1x32xbf16> to vector<1x32xf32>
    %9 = vector.broadcast %8 : vector<1x32xf32> to vector<8x32xf32>
    %10 = arith.addf %6, %9 : vector<8x32xf32>
    %cst_7 = arith.constant 0.000000e+00 : f32
    %11 = vector.broadcast %cst_7 : f32 to vector<8x32xf32>
    %12 = arith.maximumf %10, %11 : vector<8x32xf32>
    %13 = arith.truncf %12 : vector<8x32xf32> to vector<8x32xbf16>
    %14 = vector.extract_strided_slice %3 {offsets = [0, 0], sizes = [32, 32], strides = [1, 1]} : vector<33x32xbf16> to vector<32x32xbf16>
    %cst_8 = arith.constant dense<0.000000e+00> : vector<8x32xf32>
    %15 = tpu.matmul %13, %14, %cst_8 {dimension_numbers = #tpu.dot_dimension_numbers<[1], [0], [0], [1], [0, 0, 1, 1], [], []>} : vector<8x32xbf16>, vector<32x32xbf16>, vector<8x32xf32> -> vector<8x32xf32>
    %16 = vector.extract_strided_slice %3 {offsets = [32, 0], sizes = [1, 32], strides = [1, 1]} : vector<33x32xbf16> to vector<1x32xbf16>
    %17 = arith.extf %16 : vector<1x32xbf16> to vector<1x32xf32>
    %18 = vector.broadcast %17 : vector<1x32xf32> to vector<8x32xf32>
    %19 = arith.addf %15, %18 : vector<8x32xf32>
    %cst_9 = arith.constant 0.000000e+00 : f32
    %20 = vector.broadcast %cst_9 : f32 to vector<8x32xf32>
    %21 = arith.maximumf %19, %20 : vector<8x32xf32>
    %22 = arith.truncf %21 : vector<8x32xf32> to vector<8x32xbf16>
    %23 = vector.extract_strided_slice %4 {offsets = [0, 0], sizes = [32, 8], strides = [1, 1]} : vector<33x8xbf16> to vector<32x8xbf16>
    %cst_10 = arith.constant dense<0.000000e+00> : vector<8x8xf32>
    %24 = tpu.matmul %22, %23, %cst_10 {dimension_numbers = #tpu.dot_dimension_numbers<[1], [0], [0], [1], [0, 0, 1, 1], [], []>} : vector<8x32xbf16>, vector<32x8xbf16>, vector<8x8xf32> -> vector<8x8xf32>
    %25 = vector.extract_strided_slice %4 {offsets = [32, 0], sizes = [1, 8], strides = [1, 1]} : vector<33x8xbf16> to vector<1x8xbf16>
    %26 = arith.extf %25 : vector<1x8xbf16> to vector<1x8xf32>
    %27 = vector.broadcast %26 : vector<1x8xf32> to vector<8x8xf32>
    %28 = arith.addf %24, %27 : vector<8x8xf32>
    %29 = math.tanh %28 : vector<8x8xf32>
    %c0_11 = arith.constant 0 : index
    %c0_12 = arith.constant 0 : index
    %30 = vector.load %arg5[%c0_11, %c0_12] : memref<8x8xf32, #tpu.memory_space<vmem>>, vector<8x8xf32>
    tpu.vector_store %arg5[%c0_11, %c0_12], %29 {strides = array<i32>} : memref<8x8xf32, #tpu.memory_space<vmem>>, vector<8x8xf32>,
    return
  }
  func.func @transform_0(%arg0: i32) -> (i32, i32) {
    %c0_i32 = arith.constant 0 : i32
    %c0_i32_0 = arith.constant 0 : i32
    return %arg0, %c0_i32 : i32, i32
  }
  func.func @transform_1(%arg0: i32) -> (i32, i32) {
    %c0_i32 = arith.constant 0 : i32
    %c0_i32_0 = arith.constant 0 : i32
    %c0_i32_1 = arith.constant 0 : i32
    return %c0_i32, %c0_i32_0 : i32, i32
  }
  func.func @transform_2(%arg0: i32) -> (i32, i32) {
    %c0_i32 = arith.constant 0 : i32
    %c0_i32_0 = arith.constant 0 : i32
    %c0_i32_1 = arith.constant 0 : i32
    return %c0_i32, %c0_i32_0 : i32, i32
  }
  func.func @transform_3(%arg0: i32) -> (i32, i32) {
    %c0_i32 = arith.constant 0 : i32
    %c0_i32_0 = arith.constant 0 : i32
    %c0_i32_1 = arith.constant 0 : i32
    return %c0_i32, %c0_i32_0 : i32, i32
  }
  func.func @transform_4(%arg0: i32) -> (i32, i32) {
    %c0_i32 = arith.constant 0 : i32
    %c0_i32_0 = arith.constant 0 : i32
    return %arg0, %c0_i32 : i32, i32
  }
}

</mosaic_0001>

<llo_original>
// kernel: tpu_custom_call.1
$region0: #{tpu_custom_call.1}
  #allocation0 [shape = 'u32[]', space=smem, size = 0x4, offset = 0x4, fixed_abs, tag = 'smem constant byte address 0x4 - core index']
  #allocation1 [shape = 'u32[144,128]{1,0:T(1,128)}', space=vmem, size = 0x12000, scoped, tag = 'internal scratch']
  %s0 = inlined_call_operand.vmem [shape: f32[8,16], index: 0, kind: input, shape index: {}]
  %s1 = inlined_call_operand.vmem [shape: bf16[17,32], index: 1, kind: input, shape index: {}]
  %s2 = inlined_call_operand.vmem [shape: bf16[33,32], index: 2, kind: input, shape index: {}]
  %s3 = inlined_call_operand.vmem [shape: bf16[33,8], index: 3, kind: input, shape index: {}]
  %s4 = inlined_call_operand.hbm [shape: f32[8,8], index: 4, kind: output, shape index: {}]
  %s5 = sld [smem:[#allocation0]]
  $region26: #{tpu_custom_call.1} parent=0
    _
  %s7 = ssub.s32 1, %s5
  %s8 = scalar_select 0, %s7, %s5
  $region1: #{tpu_custom_call.1} parent=0
    #allocation2 [shape = 'u8[4096]{0}', space=vmem, size = 0x1000, scoped, tag = 'output window, operand 0, single buffered']
    #allocation3 [shape = 's32[1]{0}', space=sflag, size = 0x4, scoped, tag = 'scoped memory for tpu_custom_call.1']
    %9 = vsyncpa [#allocation3], 0
    // Predicated region
    $region2: #{tpu_custom_call.1} parent=1 // pred_check
      _
    $region3: #{tpu_custom_call.1} parent=1 // pred_check_branch
      %11 = sbr.rel (0) target = $region5
    $region4: #{tpu_custom_call.1} parent=1 // pred_region
      _
    $region5: #{tpu_custom_call.1} parent=1 // pred_fallthru
      _
    // Predicated region
    $region6: #{tpu_custom_call.1} parent=1 // pred_check
      _
    $region7: #{tpu_custom_call.1} parent=1 // pred_check_branch
      %13 = sbr.rel (0) target = $region9
    $region8: #{tpu_custom_call.1} parent=1 // pred_region
      _
    $region9: #{tpu_custom_call.1} parent=1 // pred_fallthru
      _
    // Predicated region
    $region10: #{tpu_custom_call.1} parent=1 // pred_check
      _
    $region11: #{tpu_custom_call.1} parent=1 // pred_check_branch
      %15 = sbr.rel (0) target = $region13
    $region12: #{tpu_custom_call.1} parent=1 // pred_region
      _
    $region13: #{tpu_custom_call.1} parent=1 // pred_fallthru
      _
    // Predicated region
    $region14: #{tpu_custom_call.1} parent=1 // pred_check
      _
    $region15: #{tpu_custom_call.1} parent=1 // pred_check_branch
      %17 = sbr.rel (0) target = $region17
    $region16: #{tpu_custom_call.1} parent=1 // pred_region
      _
    $region17: #{tpu_custom_call.1} parent=1 // pred_fallthru
      _
    %v19 = vld [vmem:[%s0] sm:$0xff]
    %v20 = vpack.c.bf16 %v19, %v19
    %v21 = vld [vmem:[%s1] sm:$0xf]
    %v22 = vld [vmem:[%s1 + $0x4] sm:$0xf]
    %v23 = vld [vmem:[%s1 + $0x8] sm:$0x1]
    %v24 = vld [vmem:[%s2] sm:$0xf]
    %v25 = vld [vmem:[%s2 + $0x4] sm:$0xf]
    %v26 = vld [vmem:[%s2 + $0x8] sm:$0xf]
    %v27 = vld [vmem:[%s2 + $0xc] sm:$0xf]
    %v28 = vld [vmem:[%s2 + $0x10] sm:$0x1]
    %v29 = vld [vmem:[%s3] sm:$0xf]
    %v30 = vld [vmem:[%s3 + $0x4] sm:$0xf]
    %v31 = vld [vmem:[%s3 + $0x8] sm:$0xf]
    %v32 = vld [vmem:[%s3 + $0xc] sm:$0xf]
    %v33 = vld [vmem:[%s3 + $0x10] sm:$0x1]
    %v34 = vunpack.c.l.bf16 %v23
    %v35 = vlaneseq
    %v36 = vshrl.u32 %v35, 7
    %v37 = vsub.s32 0, %v36
    %v38 = vrot.slane %v34, %v37
    %v41 = vunpack.c.l.b16 %v21
    %v42 = vunpack.c.l.b16 %v22
    %v43 = vpack.c.b16 %v42, %v41
    %vm45 = vcmask 130048
    %v47 = vsel %vm45, %v20, 0
    %49 = vmatprep.subr.bf16.mxu0 0
    %50 = vmatpush1.bf16.msra.mxu0 %v43
    %51 = vmatprep.subr.bf16.mxu0 0
    %52 = vmatpush1.bf16.msra.mxu0 0
    %53 = vmatprep.subr.bf16.mxu0 0
    %54 = vmatpush1.bf16.msra.mxu0 0
    %55 = vmatprep.subr.bf16.mxu0 0
    %56 = vmatpush1.bf16.msra.mxu0 0
    %57 = vmatprep.subr.bf16.mxu0 0
    %58 = vmatpush1.bf16.msra.mxu0 0
    %59 = vmatprep.subr.bf16.mxu0 0
    %60 = vmatpush1.bf16.msra.mxu0 0
    %61 = vmatprep.subr.bf16.mxu0 0
    %62 = vmatpush1.bf16.msra.mxu0 0
    %63 = vmatprep.subr.bf16.mxu0 0
    %64 = vmatpush1.bf16.msra.mxu0 0
    %65 = vmatprep.subr.bf16.mxu0 0
    %66 = vmatpush1.bf16.msra.mxu0 0
    %67 = vmatprep.subr.bf16.mxu0 0
    %68 = vmatpush1.bf16.msra.mxu0 0
    %69 = vmatprep.subr.bf16.mxu0 0
    %70 = vmatpush1.bf16.msra.mxu0 0
    %71 = vmatprep.subr.bf16.mxu0 0
    %72 = vmatpush1.bf16.msra.mxu0 0
    %73 = vmatprep.subr.bf16.mxu0 0
    %74 = vmatpush1.bf16.msra.mxu0 0
    %75 = vmatprep.subr.bf16.mxu0 0
    %76 = vmatpush1.bf16.msra.mxu0 0
    %77 = vmatprep.subr.bf16.mxu0 0
    %78 = vmatpush1.bf16.msra.mxu0 0
    %79 = vmatprep.subr.bf16.mxu0 0
    %80 = vmatpush1.bf16.msra.mxu0 0
    %81 = vmatprep.mubr.bf16.mxu0 0
    %82 = vmatmul.mubr.bf16.gmra.mrb[0].mxu0 %v47
    %v83 = vpop.f32.mrb[0].mxu0
    %v84 = vadd.f32 %v38, %v83
    %v85 = vpop.f32.mrb[0].mxu0
    %v86 = vpop.f32.mrb[0].mxu0
    %v87 = vpop.f32.mrb[0].mxu0
    %88 = vdwg.mxu0
    %v89 = vmax.f32 %v84, 0.0
    %v90 = vpack.c.bf16 %v89, %v89
    %v91 = vunpack.c.l.bf16 %v28
    %v92 = vlaneseq
    %v93 = vshrl.u32 %v92, 7
    %v94 = vsub.s32 0, %v93
    %v95 = vrot.slane %v91, %v94
    %v100 = vunpack.c.l.b16 %v24
    %v101 = vunpack.c.l.b16 %v25
    %v102 = vunpack.c.l.b16 %v26
    %v103 = vunpack.c.l.b16 %v27
    %v104 = vpack.c.b16 %v101, %v100
    %v105 = vpack.c.b16 %v103, %v102
    %vm108 = vcmask 261120
    %v110 = vsel %vm108, %v90, 0
    %112 = vmatprep.subr.bf16.mxu0 0
    %113 = vmatpush1.bf16.msra.mxu0 %v104
    %114 = vmatprep.subr.bf16.mxu0 0
    %115 = vmatpush1.bf16.msra.mxu0 %v105
    %116 = vmatprep.subr.bf16.mxu0 0
    %117 = vmatpush1.bf16.msra.mxu0 0
    %118 = vmatprep.subr.bf16.mxu0 0
    %119 = vmatpush1.bf16.msra.mxu0 0
    %120 = vmatprep.subr.bf16.mxu0 0
    %121 = vmatpush1.bf16.msra.mxu0 0
    %122 = vmatprep.subr.bf16.mxu0 0
    %123 = vmatpush1.bf16.msra.mxu0 0
    %124 = vmatprep.subr.bf16.mxu0 0
    %125 = vmatpush1.bf16.msra.mxu0 0
    %126 = vmatprep.subr.bf16.mxu0 0
    %127 = vmatpush1.bf16.msra.mxu0 0
    %128 = vmatprep.subr.bf16.mxu0 0
    %129 = vmatpush1.bf16.msra.mxu0 0
    %130 = vmatprep.subr.bf16.mxu0 0
    %131 = vmatpush1.bf16.msra.mxu0 0
    %132 = vmatprep.subr.bf16.mxu0 0
    %133 = vmatpush1.bf16.msra.mxu0 0
    %134 = vmatprep.subr.bf16.mxu0 0
    %135 = vmatpush1.bf16.msra.mxu0 0
    %136 = vmatprep.subr.bf16.mxu0 0
    %137 = vmatpush1.bf16.msra.mxu0 0
    %138 = vmatprep.subr.bf16.mxu0 0
    %139 = vmatpush1.bf16.msra.mxu0 0
    %140 = vmatprep.subr.bf16.mxu0 0
    %141 = vmatpush1.bf16.msra.mxu0 0
    %142 = vmatprep.subr.bf16.mxu0 0
    %143 = vmatpush1.bf16.msra.mxu0 0
    %144 = vmatprep.mubr.bf16.mxu0 0
    %145 = vmatmul.mubr.bf16.gmra.mrb[0].mxu0 %v110
    %v146 = vpop.f32.mrb[0].mxu0
    %v147 = vadd.f32 %v95, %v146
    %v148 = vpop.f32.mrb[0].mxu0
    %v149 = vpop.f32.mrb[0].mxu0
    %v150 = vpop.f32.mrb[0].mxu0
    %151 = vdwg.mxu0
    %v152 = vmax.f32 %v147, 0.0
    %v153 = vpack.c.bf16 %v152, %v152
    %v154 = vunpack.c.l.bf16 %v33
    %v155 = vlaneseq
    %v156 = vshrl.u32 %v155, 7
    %v157 = vsub.s32 0, %v156
    %v158 = vrot.slane %v154, %v157
    %v163 = vunpack.c.l.b16 %v29
    %v164 = vunpack.c.l.b16 %v30
    %v165 = vunpack.c.l.b16 %v31
    %v166 = vunpack.c.l.b16 %v32
    %v167 = vpack.c.b16 %v164, %v163
    %v168 = vpack.c.b16 %v166, %v165
    %v172 = vsel %vm108, %v153, 0
    %174 = vmatprep.subr.bf16.mxu0 0
    %175 = vmatpush1.bf16.msra.mxu0 %v167
    %176 = vmatprep.subr.bf16.mxu0 0
    %177 = vmatpush1.bf16.msra.mxu0 %v168
    %178 = vmatprep.subr.bf16.mxu0 0
    %179 = vmatpush1.bf16.msra.mxu0 0
    %180 = vmatprep.subr.bf16.mxu0 0
    %181 = vmatpush1.bf16.msra.mxu0 0
    %182 = vmatprep.subr.bf16.mxu0 0
    %183 = vmatpush1.bf16.msra.mxu0 0
    %184 = vmatprep.subr.bf16.mxu0 0
    %185 = vmatpush1.bf16.msra.mxu0 0
    %186 = vmatprep.subr.bf16.mxu0 0
    %187 = vmatpush1.bf16.msra.mxu0 0
    %188 = vmatprep.subr.bf16.mxu0 0
    %189 = vmatpush1.bf16.msra.mxu0 0
    %190 = vmatprep.subr.bf16.mxu0 0
    %191 = vmatpush1.bf16.msra.mxu0 0
    %192 = vmatprep.subr.bf16.mxu0 0
    %193 = vmatpush1.bf16.msra.mxu0 0
    %194 = vmatprep.subr.bf16.mxu0 0
    %195 = vmatpush1.bf16.msra.mxu0 0
    %196 = vmatprep.subr.bf16.mxu0 0
    %197 = vmatpush1.bf16.msra.mxu0 0
    %198 = vmatprep.subr.bf16.mxu0 0
    %199 = vmatpush1.bf16.msra.mxu0 0
    %200 = vmatprep.subr.bf16.mxu0 0
    %201 = vmatpush1.bf16.msra.mxu0 0
    %202 = vmatprep.subr.bf16.mxu0 0
    %203 = vmatpush1.bf16.msra.mxu0 0
    %204 = vmatprep.subr.bf16.mxu0 0
    %205 = vmatpush1.bf16.msra.mxu0 0
    %206 = vmatprep.mubr.bf16.mxu0 0
    %207 = vmatmul.mubr.bf16.gmra.mrb[0].mxu0 %v172
    %v208 = vpop.f32.mrb[0].mxu0
    %v209 = vadd.f32 %v158, %v208
    %v210 = vpop.f32.mrb[0].mxu0
    %v211 = vpop.f32.mrb[0].mxu0
    %v212 = vpop.f32.mrb[0].mxu0
    %213 = vdwg.mxu0
    %v214 = vtanh.pop %v209
    %vm215 = vcmask 64512
    %216 = vst.msk [vmem:[#allocation2] sm:$0xff] %vm215, %v214
    // Predicated region
    $region18: #{tpu_custom_call.1} parent=1 // pred_check
      _
    $region19: #{tpu_custom_call.1} parent=1 // pred_check_branch
      %218 = sbr.rel (0) target = $region21
    $region20: #{tpu_custom_call.1} parent=1 // pred_region
      %s220 = ssub.s32 128, 128
      %221 = vsyncadd [#allocation3], %s220
      %s223 = sshll.u32 [#allocation2], 4
      %s224 = int_to_ptr.vmem [resolvable:$true] %s223
      %226 = dma.vmem_to_hbm [thread:$0]  %s224, 128, %s4, [#allocation3]
    $region21: #{tpu_custom_call.1} parent=1 // pred_fallthru
      _
    // Predicated region
    $region22: #{tpu_custom_call.1} parent=1 // pred_check
      _
    $region23: #{tpu_custom_call.1} parent=1 // pred_check_branch
      %228 = sbr.rel (0) target = $region25
    $region24: #{tpu_custom_call.1} parent=1 // pred_region
      %229 = dma.done [#allocation3], 128
    $region25: #{tpu_custom_call.1} parent=1 // pred_fallthru
      _
    %230 = vsyncpa [#allocation3], 1

</llo_original>
